<compile_context>
chip_gen: v5e
topology: v5e:2x2
jax: 0.10.0
libtpu: 0.0.40
codegen_flags: <defaults>
</compile_context>

<pallas_src>
import jax
import jax.numpy as jnp
from jax.experimental import pallas as pl
from jax.experimental.pallas import tpu as pltpu


def policy_pi_kernel(s_ref,
                     w1_ref, b1_ref,
                     w2_ref, b2_ref,
                     w3_ref, b3_ref,
                     w4_ref, b4_ref,
                     o_ref):
    """Fused forward: 3x (Linear + ReLU) + final Linear, all resident in VMEM.

    Weights are bf16 [in, out]; matmuls accumulate in f32 on the MXU; bias add
    and ReLU are done in f32 on the VPU.
    """
    x = s_ref[...].astype(jnp.bfloat16)

    h = jnp.dot(x, w1_ref[...], preferred_element_type=jnp.float32) + b1_ref[...]
    h = jnp.maximum(h, 0.0).astype(jnp.bfloat16)

    h = jnp.dot(h, w2_ref[...], preferred_element_type=jnp.float32) + b2_ref[...]
    h = jnp.maximum(h, 0.0).astype(jnp.bfloat16)

    h = jnp.dot(h, w3_ref[...], preferred_element_type=jnp.float32) + b3_ref[...]
    h = jnp.maximum(h, 0.0).astype(jnp.bfloat16)

    logits = jnp.dot(h, w4_ref[...], preferred_element_type=jnp.float32) + b4_ref[...]
    o_ref[...] = logits.astype(o_ref.dtype)


def _round_up(x, m):
    return ((x + m - 1) // m) * m


def _pad2(x, rows, cols):
    return jnp.pad(x, ((0, rows - x.shape[0]), (0, cols - x.shape[1])))


def policy_pi_forward(s, params, *, block_b=None):
    """s: [B, input_dim] float32.  params: dict of (in,out) f32 weights and (1,out) f32 biases."""
    B, din = s.shape
    dh = params["w1"].shape[1]
    n_out = params["w4"].shape[1]

    # ---- lane-dense padding (multiples of 128 on every feature axis) ----
    din_p = _round_up(din, 128)
    dh_p = _round_up(dh, 128)
    nout_p = _round_up(n_out, 128)

    s_p = jnp.pad(s, ((0, 0), (0, din_p - din)))

    w1 = _pad2(params["w1"], din_p, dh_p).astype(jnp.bfloat16)
    w2 = _pad2(params["w2"], dh_p, dh_p).astype(jnp.bfloat16)
    w3 = _pad2(params["w3"], dh_p, dh_p).astype(jnp.bfloat16)
    w4 = _pad2(params["w4"], dh_p, nout_p).astype(jnp.bfloat16)
    b1 = _pad2(params["b1"], 1, dh_p)
    b2 = _pad2(params["b2"], 1, dh_p)
    b3 = _pad2(params["b3"], 1, dh_p)
    b4 = _pad2(params["b4"], 1, nout_p)

    # ---- batch tile: whole batch when tiny, else large MXU-aligned tile ----
    if block_b is None:
        block_b = B if B <= 512 else 512
    block_b = min(block_b, B)
    grid = (pl.cdiv(B, block_b),)

    # ---- VMEM budget (weights are double-buffered by the default pipeline) ----
    w_bytes = 2 * (din_p * dh_p + 2 * dh_p * dh_p + dh_p * nout_p)        # bf16
    b_bytes = 4 * (3 * dh_p + nout_p)                                     # f32
    io_bytes = 4 * block_b * (din_p + nout_p) * 2                         # 2-deep in/out tiles
    tmp_bytes = 4 * block_b * dh_p * 4                                    # intermediates headroom
    vmem_needed = 2 * (w_bytes + b_bytes) + io_bytes + tmp_bytes
    vmem_limit = int(min(max(2 * vmem_needed, 32 * 1024 * 1024), 64 * 1024 * 1024))

    def full_spec(arr):
        # whole parameter resident in VMEM every grid step
        return pl.BlockSpec(arr.shape, lambda i: (0, 0))

    out_padded = pl.pallas_call(
        policy_pi_kernel,
        out_shape=jax.ShapeDtypeStruct((B, nout_p), jnp.float32),
        grid_spec=pltpu.PrefetchScalarGridSpec(
            num_scalar_prefetch=0,
            grid=grid,
            in_specs=[
                pl.BlockSpec((block_b, din_p), lambda i: (i, 0)),   # activations tiled on batch
                full_spec(w1), full_spec(b1),
                full_spec(w2), full_spec(b2),
                full_spec(w3), full_spec(b3),
                full_spec(w4), full_spec(b4),
            ],
            out_specs=pl.BlockSpec((block_b, nout_p), lambda i: (i, 0)),
        ),
        compiler_params=pltpu.CompilerParams(
            dimension_semantics=("parallel",),
            vmem_limit_bytes=vmem_limit),
    )(s_p, w1, b1, w2, b2, w3, b3, w4, b4)

    # drop the zero-padded logit columns (lane-dense store inside the kernel,
    # cheap slice outside it)
    return out_padded[:, :n_out]


def init_params(key, input_dim, hidden_dim=256, n_classes=5):
    """Deterministic synthetic init (matches PyTorch Linear shapes, stored as (in,out))."""
    keys = jax.random.split(key, 8)
    dims = [(input_dim, hidden_dim),
            (hidden_dim, hidden_dim),
            (hidden_dim, hidden_dim),
            (hidden_dim, n_classes)]
    params = {}
    for idx, (din, dout) in enumerate(dims, start=1):
        bound = 1.0 / jnp.sqrt(din)
        params[f"w{idx}"] = jax.random.uniform(
            keys[2 * (idx - 1)], (din, dout), jnp.float32, -bound, bound)
        params[f"b{idx}"] = jax.random.uniform(
            keys[2 * (idx - 1) + 1], (1, dout), jnp.float32, -bound, bound)
    return params


def reference_forward(s, params):
    h = jnp.maximum(s @ params["w1"] + params["b1"], 0.0)
    h = jnp.maximum(h @ params["w2"] + params["b2"], 0.0)
    h = jnp.maximum(h @ params["w3"] + params["b3"], 0.0)
    return h @ params["w4"] + params["b4"]


if __name__ == "__main__":
    key = jax.random.PRNGKey(0)
    k_param, k_input = jax.random.split(key)

    batch, input_dim, hidden_dim = 8, 32, 256
    params = init_params(k_param, input_dim, hidden_dim)
    s = jax.random.normal(k_input, (batch, input_dim), jnp.float32)

    logits = policy_pi_forward(s, params)
    jax.block_until_ready(logits)

    ref = reference_forward(s, params)
    assert logits.shape == (batch, 5)
    # bf16 weights / bf16 activation feeds with f32 accumulation -> loosened tolerance
    assert jnp.allclose(logits, ref, atol=5e-2, rtol=5e-2), (
        f"max abs err {jnp.max(jnp.abs(logits - ref))}")

    print("KERNEL_OK")
</pallas_src>

<mosaic_0001>
module attributes {stable_mosaic.version = 11 : i64} {
  func.func @policy_pi_kernel(%arg0: i32, %arg1: memref<8x128xf32, #tpu.memory_space<vmem>>, %arg2: memref<128x256xbf16, #tpu.memory_space<vmem>>, %arg3: memref<1x256xf32, #tpu.memory_space<vmem>>, %arg4: memref<256x256xbf16, #tpu.memory_space<vmem>>, %arg5: memref<1x256xf32, #tpu.memory_space<vmem>>, %arg6: memref<256x256xbf16, #tpu.memory_space<vmem>>, %arg7: memref<1x256xf32, #tpu.memory_space<vmem>>, %arg8: memref<256x128xbf16, #tpu.memory_space<vmem>>, %arg9: memref<1x128xf32, #tpu.memory_space<vmem>>, %arg10: memref<8x128xf32, #tpu.memory_space<vmem>>) attributes {dimension_semantics = [#tpu.dimension_semantics<parallel>], iteration_bounds = array<i64: 1>, scalar_prefetch = 0 : i64, scratch_operands = 0 : i64, tpu.core_type = #tpu.core_type<tc>, window_params = [{transform_indices = @transform_0, window_bounds = array<i64: 8, 128>}, {pipeline_mode = #tpu.pipeline_mode<synchronous>, transform_indices = @transform_1, window_bounds = array<i64: 128, 256>}, {pipeline_mode = #tpu.pipeline_mode<synchronous>, transform_indices = @transform_2, window_bounds = array<i64: 1, 256>}, {pipeline_mode = #tpu.pipeline_mode<synchronous>, transform_indices = @transform_3, window_bounds = array<i64: 256, 256>}, {pipeline_mode = #tpu.pipeline_mode<synchronous>, transform_indices = @transform_4, window_bounds = array<i64: 1, 256>}, {pipeline_mode = #tpu.pipeline_mode<synchronous>, transform_indices = @transform_5, window_bounds = array<i64: 256, 256>}, {pipeline_mode = #tpu.pipeline_mode<synchronous>, transform_indices = @transform_6, window_bounds = array<i64: 1, 256>}, {pipeline_mode = #tpu.pipeline_mode<synchronous>, transform_indices = @transform_7, window_bounds = array<i64: 256, 128>}, {pipeline_mode = #tpu.pipeline_mode<synchronous>, transform_indices = @transform_8, window_bounds = array<i64: 1, 128>}, {transform_indices = @transform_9, window_bounds = array<i64: 8, 128>}]} {
    %c0 = arith.constant 0 : index
    %c0_0 = arith.constant 0 : index
    %0 = vector.load %arg1[%c0, %c0_0] : memref<8x128xf32, #tpu.memory_space<vmem>>, vector<8x128xf32>
    %1 = arith.truncf %0 : vector<8x128xf32> to vector<8x128xbf16>
    %c0_1 = arith.constant 0 : index
    %c0_2 = arith.constant 0 : index
    %2 = vector.load %arg2[%c0_1, %c0_2] : memref<128x256xbf16, #tpu.memory_space<vmem>>, vector<128x256xbf16>
    %cst = arith.constant dense<0.000000e+00> : vector<8x256xf32>
    %3 = tpu.matmul %1, %2, %cst {dimension_numbers = #tpu.dot_dimension_numbers<[1], [0], [0], [1], [0, 0, 1, 1], [], []>} : vector<8x128xbf16>, vector<128x256xbf16>, vector<8x256xf32> -> vector<8x256xf32>
    %c0_3 = arith.constant 0 : index
    %c0_4 = arith.constant 0 : index
    %4 = vector.load %arg3[%c0_3, %c0_4] : memref<1x256xf32, #tpu.memory_space<vmem>>, vector<1x256xf32>
    %5 = vector.broadcast %4 : vector<1x256xf32> to vector<8x256xf32>
    %6 = arith.addf %3, %5 : vector<8x256xf32>
    %cst_5 = arith.constant 0.000000e+00 : f32
    %7 = vector.broadcast %cst_5 : f32 to vector<8x256xf32>
    %8 = arith.maximumf %6, %7 : vector<8x256xf32>
    %9 = arith.truncf %8 : vector<8x256xf32> to vector<8x256xbf16>
    %c0_6 = arith.constant 0 : index
    %c0_7 = arith.constant 0 : index
    %10 = vector.load %arg4[%c0_6, %c0_7] : memref<256x256xbf16, #tpu.memory_space<vmem>>, vector<256x256xbf16>
    %cst_8 = arith.constant dense<0.000000e+00> : vector<8x256xf32>
    %11 = tpu.matmul %9, %10, %cst_8 {dimension_numbers = #tpu.dot_dimension_numbers<[1], [0], [0], [1], [0, 0, 1, 1], [], []>} : vector<8x256xbf16>, vector<256x256xbf16>, vector<8x256xf32> -> vector<8x256xf32>
    %c0_9 = arith.constant 0 : index
    %c0_10 = arith.constant 0 : index
    %12 = vector.load %arg5[%c0_9, %c0_10] : memref<1x256xf32, #tpu.memory_space<vmem>>, vector<1x256xf32>
    %13 = vector.broadcast %12 : vector<1x256xf32> to vector<8x256xf32>
    %14 = arith.addf %11, %13 : vector<8x256xf32>
    %cst_11 = arith.constant 0.000000e+00 : f32
    %15 = vector.broadcast %cst_11 : f32 to vector<8x256xf32>
    %16 = arith.maximumf %14, %15 : vector<8x256xf32>
    %17 = arith.truncf %16 : vector<8x256xf32> to vector<8x256xbf16>
    %c0_12 = arith.constant 0 : index
    %c0_13 = arith.constant 0 : index
    %18 = vector.load %arg6[%c0_12, %c0_13] : memref<256x256xbf16, #tpu.memory_space<vmem>>, vector<256x256xbf16>
    %cst_14 = arith.constant dense<0.000000e+00> : vector<8x256xf32>
    %19 = tpu.matmul %17, %18, %cst_14 {dimension_numbers = #tpu.dot_dimension_numbers<[1], [0], [0], [1], [0, 0, 1, 1], [], []>} : vector<8x256xbf16>, vector<256x256xbf16>, vector<8x256xf32> -> vector<8x256xf32>
    %c0_15 = arith.constant 0 : index
    %c0_16 = arith.constant 0 : index
    %20 = vector.load %arg7[%c0_15, %c0_16] : memref<1x256xf32, #tpu.memory_space<vmem>>, vector<1x256xf32>
    %21 = vector.broadcast %20 : vector<1x256xf32> to vector<8x256xf32>
    %22 = arith.addf %19, %21 : vector<8x256xf32>
    %cst_17 = arith.constant 0.000000e+00 : f32
    %23 = vector.broadcast %cst_17 : f32 to vector<8x256xf32>
    %24 = arith.maximumf %22, %23 : vector<8x256xf32>
    %25 = arith.truncf %24 : vector<8x256xf32> to vector<8x256xbf16>
    %c0_18 = arith.constant 0 : index
    %c0_19 = arith.constant 0 : index
    %26 = vector.load %arg8[%c0_18, %c0_19] : memref<256x128xbf16, #tpu.memory_space<vmem>>, vector<256x128xbf16>
    %cst_20 = arith.constant dense<0.000000e+00> : vector<8x128xf32>
    %27 = tpu.matmul %25, %26, %cst_20 {dimension_numbers = #tpu.dot_dimension_numbers<[1], [0], [0], [1], [0, 0, 1, 1], [], []>} : vector<8x256xbf16>, vector<256x128xbf16>, vector<8x128xf32> -> vector<8x128xf32>
    %c0_21 = arith.constant 0 : index
    %c0_22 = arith.constant 0 : index
    %28 = vector.load %arg9[%c0_21, %c0_22] : memref<1x128xf32, #tpu.memory_space<vmem>>, vector<1x128xf32>
    %29 = vector.broadcast %28 : vector<1x128xf32> to vector<8x128xf32>
    %30 = arith.addf %27, %29 : vector<8x128xf32>
    %c0_23 = arith.constant 0 : index
    %c0_24 = arith.constant 0 : index
    %31 = vector.load %arg10[%c0_23, %c0_24] : memref<8x128xf32, #tpu.memory_space<vmem>>, vector<8x128xf32>
    tpu.vector_store %arg10[%c0_23, %c0_24], %30 {strides = array<i32>} : memref<8x128xf32, #tpu.memory_space<vmem>>, vector<8x128xf32>,
    return
  }
  func.func @transform_0(%arg0: i32) -> (i32, i32) {
    %c0_i32 = arith.constant 0 : i32
    %c0_i32_0 = arith.constant 0 : i32
    return %arg0, %c0_i32 : i32, i32
  }
  func.func @transform_1(%arg0: i32) -> (i32, i32) {
    %c0_i32 = arith.constant 0 : i32
    %c0_i32_0 = arith.constant 0 : i32
    %c0_i32_1 = arith.constant 0 : i32
    return %c0_i32, %c0_i32_0 : i32, i32
  }
  func.func @transform_2(%arg0: i32) -> (i32, i32) {
    %c0_i32 = arith.constant 0 : i32
    %c0_i32_0 = arith.constant 0 : i32
    %c0_i32_1 = arith.constant 0 : i32
    return %c0_i32, %c0_i32_0 : i32, i32
  }
  func.func @transform_3(%arg0: i32) -> (i32, i32) {
    %c0_i32 = arith.constant 0 : i32
    %c0_i32_0 = arith.constant 0 : i32
    %c0_i32_1 = arith.constant 0 : i32
    return %c0_i32, %c0_i32_0 : i32, i32
  }
  func.func @transform_4(%arg0: i32) -> (i32, i32) {
    %c0_i32 = arith.constant 0 : i32
    %c0_i32_0 = arith.constant 0 : i32
    %c0_i32_1 = arith.constant 0 : i32
    return %c0_i32, %c0_i32_0 : i32, i32
  }
  func.func @transform_5(%arg0: i32) -> (i32, i32) {
    %c0_i32 = arith.constant 0 : i32
    %c0_i32_0 = arith.constant 0 : i32
    %c0_i32_1 = arith.constant 0 : i32
    return %c0_i32, %c0_i32_0 : i32, i32
  }
  func.func @transform_6(%arg0: i32) -> (i32, i32) {
    %c0_i32 = arith.constant 0 : i32
    %c0_i32_0 = arith.constant 0 : i32
    %c0_i32_1 = arith.constant 0 : i32
    return %c0_i32, %c0_i32_0 : i32, i32
  }
  func.func @transform_7(%arg0: i32) -> (i32, i32) {
    %c0_i32 = arith.constant 0 : i32
    %c0_i32_0 = arith.constant 0 : i32
    %c0_i32_1 = arith.constant 0 : i32
    return %c0_i32, %c0_i32_0 : i32, i32
  }
  func.func @transform_8(%arg0: i32) -> (i32, i32) {
    %c0_i32 = arith.constant 0 : i32
    %c0_i32_0 = arith.constant 0 : i32
    %c0_i32_1 = arith.constant 0 : i32
    return %c0_i32, %c0_i32_0 : i32, i32
  }
  func.func @transform_9(%arg0: i32) -> (i32, i32) {
    %c0_i32 = arith.constant 0 : i32
    %c0_i32_0 = arith.constant 0 : i32
    return %arg0, %c0_i32 : i32, i32
  }
}

</mosaic_0001>

<llo_original>
// kernel: tpu_custom_call.1
$region0: #{tpu_custom_call.1}
  #allocation0 [shape = 'u32[]', space=smem, size = 0x4, offset = 0x4, fixed_abs, tag = 'smem constant byte address 0x4 - core index']
  #allocation1 [shape = 'u32[72,128]{1,0:T(1,128)}', space=vmem, size = 0x9000, scoped, tag = 'internal scratch']
  %s0 = inlined_call_operand.hbm [shape: f32[8,128], index: 0, kind: input, shape index: {}]
  %s1 = inlined_call_operand.hbm [shape: bf16[128,256], index: 1, kind: input, shape index: {}]
  %s2 = inlined_call_operand.hbm [shape: f32[1,256], index: 2, kind: input, shape index: {}]
  %s3 = inlined_call_operand.hbm [shape: bf16[256,256], index: 3, kind: input, shape index: {}]
  %s4 = inlined_call_operand.vmem [shape: f32[1,256], index: 4, kind: input, shape index: {}]
  %s5 = inlined_call_operand.hbm [shape: bf16[256,256], index: 5, kind: input, shape index: {}]
  %s6 = inlined_call_operand.vmem [shape: f32[1,256], index: 6, kind: input, shape index: {}]
  %s7 = inlined_call_operand.hbm [shape: bf16[256,128], index: 7, kind: input, shape index: {}]
  %s8 = inlined_call_operand.vmem [shape: f32[1,128], index: 8, kind: input, shape index: {}]
  %s9 = inlined_call_operand.hbm [shape: f32[8,128], index: 9, kind: output, shape index: {}]
  %s10 = sld [smem:[#allocation0]]
  $region70: #{tpu_custom_call.1} parent=0
    _
  %s12 = ssub.s32 1, %s10
  %s13 = scalar_select 0, %s12, %s10
  $region1: #{tpu_custom_call.1} parent=0
    #allocation2 [shape = 'u8[4096]{0}', space=vmem, size = 0x1000, scoped, tag = 'input window, operand 0, single buffered']
    #allocation3 [shape = 's32[1]{0}', space=sflag, size = 0x4, scoped, tag = 'scoped memory for tpu_custom_call.1']
    #allocation4 [shape = 's32[1]{0}', space=sflag, size = 0x4, scoped, tag = 'scoped memory for tpu_custom_call.1']
    #allocation5 [shape = 'u8[65536]{0}', space=vmem, size = 0x10000, scoped, tag = 'input window, operand 1, single buffered']
    #allocation6 [shape = 's32[1]{0}', space=sflag, size = 0x4, scoped, tag = 'scoped memory for tpu_custom_call.1']
    #allocation7 [shape = 'u8[1024]{0}', space=vmem, size = 0x400, scoped, tag = 'input window, operand 2, single buffered']
    #allocation8 [shape = 'u8[131072]{0}', space=vmem, size = 0x20000, scoped, tag = 'input window, operand 3, single buffered']
    #allocation9 [shape = 's32[1]{0}', space=sflag, size = 0x4, scoped, tag = 'scoped memory for tpu_custom_call.1']
    #allocation10 [shape = 'u8[131072]{0}', space=vmem, size = 0x20000, scoped, tag = 'input window, operand 5, single buffered']
    #allocation11 [shape = 'u8[65536]{0}', space=vmem, size = 0x10000, scoped, tag = 'input window, operand 7, single buffered']
    #allocation12 [shape = 's32[1]{0}', space=sflag, size = 0x4, scoped, tag = 'scoped memory for tpu_custom_call.1']
    #allocation13 [shape = 'u8[4096]{0}', space=vmem, size = 0x1000, scoped, tag = 'output window, operand 0, single buffered']
    %14 = vsyncpa [#allocation3], 0
    %15 = vsyncpa [#allocation6], 0
    %16 = vsyncpa [#allocation9], 0
    %17 = vsyncpa [#allocation12], 0
    %18 = vsyncpa [#allocation4], 0
    // Predicated region
    $region2: #{tpu_custom_call.1} parent=1 // pred_check
      _
    $region3: #{tpu_custom_call.1} parent=1 // pred_check_branch
      %20 = sbr.rel (0) target = $region5
    $region4: #{tpu_custom_call.1} parent=1 // pred_region
      %22 = vsyncadd [#allocation3], 0
      %s24 = sshll.u32 %s0, 4
      %s25 = int_to_ptr.hbm [resolvable:$true] %s24
      %s26 = sshll.u32 [#allocation2], 4
      %s27 = int_to_ptr.vmem [resolvable:$true] %s26
      %29 = dma.hbm_to_vmem [thread:$0]  %s25, 128, %s27, [#allocation3]
    $region5: #{tpu_custom_call.1} parent=1 // pred_fallthru
      _
    // Predicated region
    $region6: #{tpu_custom_call.1} parent=1 // pred_check
      _
    $region7: #{tpu_custom_call.1} parent=1 // pred_check_branch
      %31 = sbr.rel (0) target = $region9
    $region8: #{tpu_custom_call.1} parent=1 // pred_region
      %33 = vsyncadd [#allocation6], 0
      %s34 = sshll.u32 %s1, 4
      %s35 = int_to_ptr.hbm [resolvable:$true] %s34
      %s36 = sshll.u32 [#allocation5], 4
      %s37 = int_to_ptr.vmem [resolvable:$true] %s36
      %42 = dma.hbm_to_vmem [thread:$0]  %s35, 2048, %s37, [#allocation6], 128, 128, 8
    $region9: #{tpu_custom_call.1} parent=1 // pred_fallthru
      _
    // Predicated region
    $region10: #{tpu_custom_call.1} parent=1 // pred_check
      _
    $region11: #{tpu_custom_call.1} parent=1 // pred_check_branch
      %44 = sbr.rel (0) target = $region13
    $region12: #{tpu_custom_call.1} parent=1 // pred_region
      %46 = vsyncadd [#allocation6], 0
      %s48 = sshll.u32 %s2, 4
      %s49 = int_to_ptr.hbm [resolvable:$true] %s48
      %s50 = sshll.u32 [#allocation7], 4
      %s51 = int_to_ptr.vmem [resolvable:$true] %s50
      %53 = dma.hbm_to_vmem [thread:$0]  %s49, 32, %s51, [#allocation6]
    $region13: #{tpu_custom_call.1} parent=1 // pred_fallthru
      _
    // Predicated region
    $region14: #{tpu_custom_call.1} parent=1 // pred_check
      _
    $region15: #{tpu_custom_call.1} parent=1 // pred_check_branch
      %55 = sbr.rel (0) target = $region17
    $region16: #{tpu_custom_call.1} parent=1 // pred_region
      %57 = vsyncadd [#allocation9], 0
      %s58 = sshll.u32 %s3, 4
      %s59 = int_to_ptr.hbm [resolvable:$true] %s58
      %s60 = sshll.u32 [#allocation8], 4
      %s61 = int_to_ptr.vmem [resolvable:$true] %s60
      %66 = dma.hbm_to_vmem [thread:$0]  %s59, 4096, %s61, [#allocation9], 128, 128, 8
    $region17: #{tpu_custom_call.1} parent=1 // pred_fallthru
      _
    // Predicated region
    $region18: #{tpu_custom_call.1} parent=1 // pred_check
      _
    $region19: #{tpu_custom_call.1} parent=1 // pred_check_branch
      %68 = sbr.rel (0) target = $region21
    $region20: #{tpu_custom_call.1} parent=1 // pred_region
      _
    $region21: #{tpu_custom_call.1} parent=1 // pred_fallthru
      _
    // Predicated region
    $region22: #{tpu_custom_call.1} parent=1 // pred_check
      _
    $region23: #{tpu_custom_call.1} parent=1 // pred_check_branch
      %70 = sbr.rel (0) target = $region25
    $region24: #{tpu_custom_call.1} parent=1 // pred_region
      %72 = vsyncadd [#allocation9], 0
      %s73 = sshll.u32 %s5, 4
      %s74 = int_to_ptr.hbm [resolvable:$true] %s73
      %s75 = sshll.u32 [#allocation10], 4
      %s76 = int_to_ptr.vmem [resolvable:$true] %s75
      %81 = dma.hbm_to_vmem [thread:$0]  %s74, 4096, %s76, [#allocation9], 128, 128, 8
    $region25: #{tpu_custom_call.1} parent=1 // pred_fallthru
      _
    // Predicated region
    $region26: #{tpu_custom_call.1} parent=1 // pred_check
      _
    $region27: #{tpu_custom_call.1} parent=1 // pred_check_branch
      %83 = sbr.rel (0) target = $region29
    $region28: #{tpu_custom_call.1} parent=1 // pred_region
      _
    $region29: #{tpu_custom_call.1} parent=1 // pred_fallthru
      _
    // Predicated region
    $region30: #{tpu_custom_call.1} parent=1 // pred_check
      _
    $region31: #{tpu_custom_call.1} parent=1 // pred_check_branch
      %85 = sbr.rel (0) target = $region33
    $region32: #{tpu_custom_call.1} parent=1 // pred_region
      %87 = vsyncadd [#allocation12], 0
      %s88 = sshll.u32 %s7, 4
      %s89 = int_to_ptr.hbm [resolvable:$true] %s88
      %s90 = sshll.u32 [#allocation11], 4
      %s91 = int_to_ptr.vmem [resolvable:$true] %s90
      %96 = dma.hbm_to_vmem [thread:$0]  %s89, 2048, %s91, [#allocation12], 64, 64, 4
    $region33: #{tpu_custom_call.1} parent=1 // pred_fallthru
      _
    // Predicated region
    $region34: #{tpu_custom_call.1} parent=1 // pred_check
      _
    $region35: #{tpu_custom_call.1} parent=1 // pred_check_branch
      %98 = sbr.rel (0) target = $region37
    $region36: #{tpu_custom_call.1} parent=1 // pred_region
      _
    $region37: #{tpu_custom_call.1} parent=1 // pred_fallthru
      _
    // Predicated region
    $region38: #{tpu_custom_call.1} parent=1 // pred_check
      _
    $region39: #{tpu_custom_call.1} parent=1 // pred_check_branch
      %100 = sbr.rel (0) target = $region41
    $region40: #{tpu_custom_call.1} parent=1 // pred_region
      %102 = dma.done [#allocation3], 128
    $region41: #{tpu_custom_call.1} parent=1 // pred_fallthru
      _
    // Predicated region
    $region42: #{tpu_custom_call.1} parent=1 // pred_check
      _
    $region43: #{tpu_custom_call.1} parent=1 // pred_check_branch
      %104 = sbr.rel (0) target = $region45
    $region44: #{tpu_custom_call.1} parent=1 // pred_region
      %106 = dma.done [#allocation6], 2048
    $region45: #{tpu_custom_call.1} parent=1 // pred_fallthru
      _
    // Predicated region
    $region46: #{tpu_custom_call.1} parent=1 // pred_check
      _
    $region47: #{tpu_custom_call.1} parent=1 // pred_check_branch
      %108 = sbr.rel (0) target = $region49
    $region48: #{tpu_custom_call.1} parent=1 // pred_region
      %110 = dma.done [#allocation6], 32
    $region49: #{tpu_custom_call.1} parent=1 // pred_fallthru
      _
    // Predicated region
    $region50: #{tpu_custom_call.1} parent=1 // pred_check
      _
    $region51: #{tpu_custom_call.1} parent=1 // pred_check_branch
      %112 = sbr.rel (0) target = $region53
    $region52: #{tpu_custom_call.1} parent=1 // pred_region
      %114 = dma.done [#allocation9], 4096
    $region53: #{tpu_custom_call.1} parent=1 // pred_fallthru
      _
    // Predicated region
    $region54: #{tpu_custom_call.1} parent=1 // pred_check
      _
    $region55: #{tpu_custom_call.1} parent=1 // pred_check_branch
      %116 = sbr.rel (0) target = $region57
    $region56: #{tpu_custom_call.1} parent=1 // pred_region
      %118 = dma.done [#allocation9], 4096
    $region57: #{tpu_custom_call.1} parent=1 // pred_fallthru
      _
    // Predicated region
    $region58: #{tpu_custom_call.1} parent=1 // pred_check
      _
    $region59: #{tpu_custom_call.1} parent=1 // pred_check_branch
      %120 = sbr.rel (0) target = $region61
    $region60: #{tpu_custom_call.1} parent=1 // pred_region
      %122 = dma.done [#allocation12], 2048
    $region61: #{tpu_custom_call.1} parent=1 // pred_fallthru
      _
    %v123 = vld [vmem:[#allocation2] sm:$0xff]
    %v124 = vpack.c.bf16 %v123, %v123
    %v125 = vld [vmem:[#allocation5] sm:$0xff]
    %v126 = vld [vmem:[#allocation5 + $0x8] sm:$0xff]
    %v127 = vld [vmem:[#allocation5 + $0x10] sm:$0xff]
    %v128 = vld [vmem:[#allocation5 + $0x18] sm:$0xff]
    %v129 = vld [vmem:[#allocation5 + $0x20] sm:$0xff]
    %v130 = vld [vmem:[#allocation5 + $0x28] sm:$0xff]
    %v131 = vld [vmem:[#allocation5 + $0x30] sm:$0xff]
    %v132 = vld [vmem:[#allocation5 + $0x38] sm:$0xff]
    %v133 = vld [vmem:[#allocation5 + $0x40] sm:$0xff]
    %v134 = vld [vmem:[#allocation5 + $0x48] sm:$0xff]
    %v135 = vld [vmem:[#allocation5 + $0x50] sm:$0xff]
    %v136 = vld [vmem:[#allocation5 + $0x58] sm:$0xff]
    %v137 = vld [vmem:[#allocation5 + $0x60] sm:$0xff]
    %v138 = vld [vmem:[#allocation5 + $0x68] sm:$0xff]
    %v139 = vld [vmem:[#allocation5 + $0x70] sm:$0xff]
    %v140 = vld [vmem:[#allocation5 + $0x78] sm:$0xff]
    %v141 = vld [vmem:[#allocation7] sm:$0x3]
    %v143 = vperm.slane %v141, 0
    %v144 = vperm.slane %v141, 1
    %v163 = vunpack.c.l.b16 %v125
    %v164 = vunpack.c.h.b16 %v125
    %v165 = vunpack.c.l.b16 %v126
    %v166 = vunpack.c.h.b16 %v126
    %v167 = vunpack.c.l.b16 %v127
    %v168 = vunpack.c.h.b16 %v127
    %v169 = vunpack.c.l.b16 %v128
    %v170 = vunpack.c.h.b16 %v128
    %v171 = vunpack.c.l.b16 %v129
    %v172 = vunpack.c.h.b16 %v129
    %v173 = vunpack.c.l.b16 %v130
    %v174 = vunpack.c.h.b16 %v130
    %v175 = vunpack.c.l.b16 %v131
    %v176 = vunpack.c.h.b16 %v131
    %v177 = vunpack.c.l.b16 %v132
    %v178 = vunpack.c.h.b16 %v132
    %v179 = vunpack.c.l.b16 %v133
    %v180 = vunpack.c.h.b16 %v133
    %v181 = vunpack.c.l.b16 %v134
    %v182 = vunpack.c.h.b16 %v134
    %v183 = vunpack.c.l.b16 %v135
    %v184 = vunpack.c.h.b16 %v135
    %v185 = vunpack.c.l.b16 %v136
    %v186 = vunpack.c.h.b16 %v136
    %v187 = vunpack.c.l.b16 %v137
    %v188 = vunpack.c.h.b16 %v137
    %v189 = vunpack.c.l.b16 %v138
    %v190 = vunpack.c.h.b16 %v138
    %v191 = vunpack.c.l.b16 %v139
    %v192 = vunpack.c.h.b16 %v139
    %v193 = vunpack.c.l.b16 %v140
    %v194 = vunpack.c.h.b16 %v140
    %v195 = vpack.c.b16 %v165, %v163
    %v196 = vpack.c.b16 %v166, %v164
    %v197 = vpack.c.b16 %v169, %v167
    %v198 = vpack.c.b16 %v170, %v168
    %v199 = vpack.c.b16 %v173, %v171
    %v200 = vpack.c.b16 %v174, %v172
    %v201 = vpack.c.b16 %v177, %v175
    %v202 = vpack.c.b16 %v178, %v176
    %v203 = vpack.c.b16 %v181, %v179
    %v204 = vpack.c.b16 %v182, %v180
    %v205 = vpack.c.b16 %v185, %v183
    %v206 = vpack.c.b16 %v186, %v184
    %v207 = vpack.c.b16 %v189, %v187
    %v208 = vpack.c.b16 %v190, %v188
    %v209 = vpack.c.b16 %v193, %v191
    %v210 = vpack.c.b16 %v194, %v192
    %227 = vmatpush.bf16.msra.mxu0 %v209
    %228 = vmatpush.bf16.msra.mxu0 %v207
    %229 = vmatpush.bf16.msra.mxu0 %v205
    %230 = vmatpush.bf16.msra.mxu0 %v203
    %231 = vmatpush.bf16.msra.mxu0 %v201
    %232 = vmatpush.bf16.msra.mxu0 %v199
    %233 = vmatpush.bf16.msra.mxu0 %v197
    %234 = vmatpush.bf16.msra.mxu0 %v195
    %235 = vmatmul.bf16.gmra.mxu0 %v124
    %v236 = vpop.f32.mrf.mxu0
    %v237 = vadd.f32 %v143, %v236
    %v238 = vpop.f32.mrf.mxu0
    %239 = vdwg.mxu0
    %240 = vmatpush.bf16.msra.mxu0 %v210
    %241 = vmatpush.bf16.msra.mxu0 %v208
    %242 = vmatpush.bf16.msra.mxu0 %v206
    %243 = vmatpush.bf16.msra.mxu0 %v204
    %244 = vmatpush.bf16.msra.mxu0 %v202
    %245 = vmatpush.bf16.msra.mxu0 %v200
    %246 = vmatpush.bf16.msra.mxu0 %v198
    %247 = vmatpush.bf16.msra.mxu0 %v196
    %248 = vmatmul.bf16.gmra.mxu0 %v124
    %v249 = vpop.f32.mrf.mxu0
    %v250 = vadd.f32 %v144, %v249
    %v251 = vpop.f32.mrf.mxu0
    %252 = vdwg.mxu0
    %v253 = vmax.f32 %v237, 0.0
    %v254 = vmax.f32 %v250, 0.0
    %v255 = vpack.c.bf16 %v253, %v253
    %v256 = vpack.c.bf16 %v254, %v254
    %v257 = vld [vmem:[#allocation8] sm:$0xff]
    %v258 = vld [vmem:[#allocation8 + $0x8] sm:$0xff]
    %v259 = vld [vmem:[#allocation8 + $0x10] sm:$0xff]
    %v260 = vld [vmem:[#allocation8 + $0x18] sm:$0xff]
    %v261 = vld [vmem:[#allocation8 + $0x20] sm:$0xff]
    %v262 = vld [vmem:[#allocation8 + $0x28] sm:$0xff]
    %v263 = vld [vmem:[#allocation8 + $0x30] sm:$0xff]
    %v264 = vld [vmem:[#allocation8 + $0x38] sm:$0xff]
    %v265 = vld [vmem:[#allocation8 + $0x40] sm:$0xff]
    %v266 = vld [vmem:[#allocation8 + $0x48] sm:$0xff]
    %v267 = vld [vmem:[#allocation8 + $0x50] sm:$0xff]
    %v268 = vld [vmem:[#allocation8 + $0x58] sm:$0xff]
    %v269 = vld [vmem:[#allocation8 + $0x60] sm:$0xff]
    %v270 = vld [vmem:[#allocation8 + $0x68] sm:$0xff]
    %v271 = vld [vmem:[#allocation8 + $0x70] sm:$0xff]
    %v272 = vld [vmem:[#allocation8 + $0x78] sm:$0xff]
    %v273 = vld [vmem:[#allocation8 + $0x80] sm:$0xff]
    %v274 = vld [vmem:[#allocation8 + $0x88] sm:$0xff]
    %v275 = vld [vmem:[#allocation8 + $0x90] sm:$0xff]
    %v276 = vld [vmem:[#allocation8 + $0x98] sm:$0xff]
    %v277 = vld [vmem:[#allocation8 + $0xa0] sm:$0xff]
    %v278 = vld [vmem:[#allocation8 + $0xa8] sm:$0xff]
    %v279 = vld [vmem:[#allocation8 + $0xb0] sm:$0xff]
    %v280 = vld [vmem:[#allocation8 + $0xb8] sm:$0xff]
    %v281 = vld [vmem:[#allocation8 + $0xc0] sm:$0xff]
    %v282 = vld [vmem:[#allocation8 + $0xc8] sm:$0xff]
    %v283 = vld [vmem:[#allocation8 + $0xd0] sm:$0xff]
    %v284 = vld [vmem:[#allocation8 + $0xd8] sm:$0xff]
    %v285 = vld [vmem:[#allocation8 + $0xe0] sm:$0xff]
    %v286 = vld [vmem:[#allocation8 + $0xe8] sm:$0xff]
    %v287 = vld [vmem:[#allocation8 + $0xf0] sm:$0xff]
    %v288 = vld [vmem:[#allocation8 + $0xf8] sm:$0xff]
    %v289 = vld [vmem:[%s4] sm:$0x3]
    %v291 = vperm.slane %v289, 0
    %v292 = vperm.slane %v289, 1
    %v327 = vunpack.c.l.b16 %v257
    %v328 = vunpack.c.h.b16 %v257
    %v329 = vunpack.c.l.b16 %v258
    %v330 = vunpack.c.h.b16 %v258
    %v331 = vunpack.c.l.b16 %v259
    %v332 = vunpack.c.h.b16 %v259
    %v333 = vunpack.c.l.b16 %v260
    %v334 = vunpack.c.h.b16 %v260
    %v335 = vunpack.c.l.b16 %v261
    %v336 = vunpack.c.h.b16 %v261
    %v337 = vunpack.c.l.b16 %v262
    %v338 = vunpack.c.h.b16 %v262
    %v339 = vunpack.c.l.b16 %v263
    %v340 = vunpack.c.h.b16 %v263
    %v341 = vunpack.c.l.b16 %v264
    %v342 = vunpack.c.h.b16 %v264
    %v343 = vunpack.c.l.b16 %v265
    %v344 = vunpack.c.h.b16 %v265
    %v345 = vunpack.c.l.b16 %v266
    %v346 = vunpack.c.h.b16 %v266
    %v347 = vunpack.c.l.b16 %v267
    %v348 = vunpack.c.h.b16 %v267
    %v349 = vunpack.c.l.b16 %v268
    %v350 = vunpack.c.h.b16 %v268
    %v351 = vunpack.c.l.b16 %v269
    %v352 = vunpack.c.h.b16 %v269
    %v353 = vunpack.c.l.b16 %v270
    %v354 = vunpack.c.h.b16 %v270
    %v355 = vunpack.c.l.b16 %v271
    %v356 = vunpack.c.h.b16 %v271
    %v357 = vunpack.c.l.b16 %v272
    %v358 = vunpack.c.h.b16 %v272
    %v359 = vunpack.c.l.b16 %v273
    %v360 = vunpack.c.h.b16 %v273
    %v361 = vunpack.c.l.b16 %v274
    %v362 = vunpack.c.h.b16 %v274
    %v363 = vunpack.c.l.b16 %v275
    %v364 = vunpack.c.h.b16 %v275
    %v365 = vunpack.c.l.b16 %v276
    %v366 = vunpack.c.h.b16 %v276
    %v367 = vunpack.c.l.b16 %v277
    %v368 = vunpack.c.h.b16 %v277
    %v369 = vunpack.c.l.b16 %v278
    %v370 = vunpack.c.h.b16 %v278
    %v371 = vunpack.c.l.b16 %v279
    %v372 = vunpack.c.h.b16 %v279
    %v373 = vunpack.c.l.b16 %v280
    %v374 = vunpack.c.h.b16 %v280
    %v375 = vunpack.c.l.b16 %v281
    %v376 = vunpack.c.h.b16 %v281
    %v377 = vunpack.c.l.b16 %v282
    %v378 = vunpack.c.h.b16 %v282
    %v379 = vunpack.c.l.b16 %v283
    %v380 = vunpack.c.h.b16 %v283
    %v381 = vunpack.c.l.b16 %v284
    %v382 = vunpack.c.h.b16 %v284
    %v383 = vunpack.c.l.b16 %v285
    %v384 = vunpack.c.h.b16 %v285
    %v385 = vunpack.c.l.b16 %v286
    %v386 = vunpack.c.h.b16 %v286
    %v387 = vunpack.c.l.b16 %v287
    %v388 = vunpack.c.h.b16 %v287
    %v389 = vunpack.c.l.b16 %v288
    %v390 = vunpack.c.h.b16 %v288
    %v391 = vpack.c.b16 %v329, %v327
    %v392 = vpack.c.b16 %v330, %v328
    %v393 = vpack.c.b16 %v333, %v331
    %v394 = vpack.c.b16 %v334, %v332
    %v395 = vpack.c.b16 %v337, %v335
    %v396 = vpack.c.b16 %v338, %v336
    %v397 = vpack.c.b16 %v341, %v339
    %v398 = vpack.c.b16 %v342, %v340
    %v399 = vpack.c.b16 %v345, %v343
    %v400 = vpack.c.b16 %v346, %v344
    %v401 = vpack.c.b16 %v349, %v347
    %v402 = vpack.c.b16 %v350, %v348
    %v403 = vpack.c.b16 %v353, %v351
    %v404 = vpack.c.b16 %v354, %v352
    %v405 = vpack.c.b16 %v357, %v355
    %v406 = vpack.c.b16 %v358, %v356
    %v407 = vpack.c.b16 %v361, %v359
    %v408 = vpack.c.b16 %v362, %v360
    %v409 = vpack.c.b16 %v365, %v363
    %v410 = vpack.c.b16 %v366, %v364
    %v411 = vpack.c.b16 %v369, %v367
    %v412 = vpack.c.b16 %v370, %v368
    %v413 = vpack.c.b16 %v373, %v371
    %v414 = vpack.c.b16 %v374, %v372
    %v415 = vpack.c.b16 %v377, %v375
    %v416 = vpack.c.b16 %v378, %v376
    %v417 = vpack.c.b16 %v381, %v379
    %v418 = vpack.c.b16 %v382, %v380
    %v419 = vpack.c.b16 %v385, %v383
    %v420 = vpack.c.b16 %v386, %v384
    %v421 = vpack.c.b16 %v389, %v387
    %v422 = vpack.c.b16 %v390, %v388
    %455 = vmatpush.bf16.msra.mxu0 %v405
    %456 = vmatpush.bf16.msra.mxu0 %v403
    %457 = vmatpush.bf16.msra.mxu0 %v401
    %458 = vmatpush.bf16.msra.mxu0 %v399
    %459 = vmatpush.bf16.msra.mxu0 %v397
    %460 = vmatpush.bf16.msra.mxu0 %v395
    %461 = vmatpush.bf16.msra.mxu0 %v393
    %462 = vmatpush.bf16.msra.mxu0 %v391
    %463 = vmatmul.bf16.gmra.mxu0 %v255
    %v464 = vpop.f32.mrf.mxu0
    %v465 = vadd.f32 %v291, %v464
    %v466 = vpop.f32.mrf.mxu0
    %467 = vdwg.mxu0
    %468 = vmatpush.bf16.msra.mxu0 %v421
    %469 = vmatpush.bf16.msra.mxu0 %v419
    %470 = vmatpush.bf16.msra.mxu0 %v417
    %471 = vmatpush.bf16.msra.mxu0 %v415
    %472 = vmatpush.bf16.msra.mxu0 %v413
    %473 = vmatpush.bf16.msra.mxu0 %v411
    %474 = vmatpush.bf16.msra.mxu0 %v409
    %475 = vmatpush.bf16.msra.mxu0 %v407
    %476 = vmatmul.bf16.gmra.mxu0 %v256
    %v477 = vpop.f32.mrf.mxu0
    %v478 = vadd.f32 %v465, %v477
    %v479 = vpop.f32.mrf.mxu0
    %480 = vdwg.mxu0
    %481 = vmatpush.bf16.msra.mxu0 %v406
    %482 = vmatpush.bf16.msra.mxu0 %v404
    %483 = vmatpush.bf16.msra.mxu0 %v402
    %484 = vmatpush.bf16.msra.mxu0 %v400
    %485 = vmatpush.bf16.msra.mxu0 %v398
    %486 = vmatpush.bf16.msra.mxu0 %v396
    %487 = vmatpush.bf16.msra.mxu0 %v394
    %488 = vmatpush.bf16.msra.mxu0 %v392
    %489 = vmatmul.bf16.gmra.mxu0 %v255
    %v490 = vpop.f32.mrf.mxu0
    %v491 = vadd.f32 %v292, %v490
    %v492 = vpop.f32.mrf.mxu0
    %493 = vdwg.mxu0
    %494 = vmatpush.bf16.msra.mxu0 %v422
    %495 = vmatpush.bf16.msra.mxu0 %v420
    %496 = vmatpush.bf16.msra.mxu0 %v418
    %497 = vmatpush.bf16.msra.mxu0 %v416
    %498 = vmatpush.bf16.msra.mxu0 %v414
    %499 = vmatpush.bf16.msra.mxu0 %v412
    %500 = vmatpush.bf16.msra.mxu0 %v410
    %501 = vmatpush.bf16.msra.mxu0 %v408
    %502 = vmatmul.bf16.gmra.mxu0 %v256
    %v503 = vpop.f32.mrf.mxu0
    %v504 = vadd.f32 %v491, %v503
    %v505 = vpop.f32.mrf.mxu0
    %506 = vdwg.mxu0
    %v507 = vmax.f32 %v478, 0.0
    %v508 = vmax.f32 %v504, 0.0
    %v509 = vpack.c.bf16 %v507, %v507
    %v510 = vpack.c.bf16 %v508, %v508
    %v511 = vld [vmem:[#allocation10] sm:$0xff]
    %v512 = vld [vmem:[#allocation10 + $0x8] sm:$0xff]
    %v513 = vld [vmem:[#allocation10 + $0x10] sm:$0xff]
    %v514 = vld [vmem:[#allocation10 + $0x18] sm:$0xff]
    %v515 = vld [vmem:[#allocation10 + $0x20] sm:$0xff]
    %v516 = vld [vmem:[#allocation10 + $0x28] sm:$0xff]
    %v517 = vld [vmem:[#allocation10 + $0x30] sm:$0xff]
    %v518 = vld [vmem:[#allocation10 + $0x38] sm:$0xff]
    %v519 = vld [vmem:[#allocation10 + $0x40] sm:$0xff]
    %v520 = vld [vmem:[#allocation10 + $0x48] sm:$0xff]
    %v521 = vld [vmem:[#allocation10 + $0x50] sm:$0xff]
    %v522 = vld [vmem:[#allocation10 + $0x58] sm:$0xff]
    %v523 = vld [vmem:[#allocation10 + $0x60] sm:$0xff]
    %v524 = vld [vmem:[#allocation10 + $0x68] sm:$0xff]
    %v525 = vld [vmem:[#allocation10 + $0x70] sm:$0xff]
    %v526 = vld [vmem:[#allocation10 + $0x78] sm:$0xff]
    %v527 = vld [vmem:[#allocation10 + $0x80] sm:$0xff]
    %v528 = vld [vmem:[#allocation10 + $0x88] sm:$0xff]
    %v529 = vld [vmem:[#allocation10 + $0x90] sm:$0xff]
    %v530 = vld [vmem:[#allocation10 + $0x98] sm:$0xff]
    %v531 = vld [vmem:[#allocation10 + $0xa0] sm:$0xff]
    %v532 = vld [vmem:[#allocation10 + $0xa8] sm:$0xff]
    %v533 = vld [vmem:[#allocation10 + $0xb0] sm:$0xff]
    %v534 = vld [vmem:[#allocation10 + $0xb8] sm:$0xff]
    %v535 = vld [vmem:[#allocation10 + $0xc0] sm:$0xff]
    %v536 = vld [vmem:[#allocation10 + $0xc8] sm:$0xff]
    %v537 = vld [vmem:[#allocation10 + $0xd0] sm:$0xff]
    %v538 = vld [vmem:[#allocation10 + $0xd8] sm:$0xff]
    %v539 = vld [vmem:[#allocation10 + $0xe0] sm:$0xff]
    %v540 = vld [vmem:[#allocation10 + $0xe8] sm:$0xff]
    %v541 = vld [vmem:[#allocation10 + $0xf0] sm:$0xff]
    %v542 = vld [vmem:[#allocation10 + $0xf8] sm:$0xff]
    %v543 = vld [vmem:[%s6] sm:$0x3]
    %v545 = vperm.slane %v543, 0
    %v546 = vperm.slane %v543, 1
    %v581 = vunpack.c.l.b16 %v511
    %v582 = vunpack.c.h.b16 %v511
    %v583 = vunpack.c.l.b16 %v512
    %v584 = vunpack.c.h.b16 %v512
    %v585 = vunpack.c.l.b16 %v513
    %v586 = vunpack.c.h.b16 %v513
    %v587 = vunpack.c.l.b16 %v514
    %v588 = vunpack.c.h.b16 %v514
    %v589 = vunpack.c.l.b16 %v515
    %v590 = vunpack.c.h.b16 %v515
    %v591 = vunpack.c.l.b16 %v516
    %v592 = vunpack.c.h.b16 %v516
    %v593 = vunpack.c.l.b16 %v517
    %v594 = vunpack.c.h.b16 %v517
    %v595 = vunpack.c.l.b16 %v518
    %v596 = vunpack.c.h.b16 %v518
    %v597 = vunpack.c.l.b16 %v519
    %v598 = vunpack.c.h.b16 %v519
    %v599 = vunpack.c.l.b16 %v520
    %v600 = vunpack.c.h.b16 %v520
    %v601 = vunpack.c.l.b16 %v521
    %v602 = vunpack.c.h.b16 %v521
    %v603 = vunpack.c.l.b16 %v522
    %v604 = vunpack.c.h.b16 %v522
    %v605 = vunpack.c.l.b16 %v523
    %v606 = vunpack.c.h.b16 %v523
    %v607 = vunpack.c.l.b16 %v524
    %v608 = vunpack.c.h.b16 %v524
    %v609 = vunpack.c.l.b16 %v525
    %v610 = vunpack.c.h.b16 %v525
    %v611 = vunpack.c.l.b16 %v526
    %v612 = vunpack.c.h.b16 %v526
    %v613 = vunpack.c.l.b16 %v527
    %v614 = vunpack.c.h.b16 %v527
    %v615 = vunpack.c.l.b16 %v528
    %v616 = vunpack.c.h.b16 %v528
    %v617 = vunpack.c.l.b16 %v529
    %v618 = vunpack.c.h.b16 %v529
    %v619 = vunpack.c.l.b16 %v530
    %v620 = vunpack.c.h.b16 %v530
    %v621 = vunpack.c.l.b16 %v531
    %v622 = vunpack.c.h.b16 %v531
    %v623 = vunpack.c.l.b16 %v532
    %v624 = vunpack.c.h.b16 %v532
    %v625 = vunpack.c.l.b16 %v533
    %v626 = vunpack.c.h.b16 %v533
    %v627 = vunpack.c.l.b16 %v534
    %v628 = vunpack.c.h.b16 %v534
    %v629 = vunpack.c.l.b16 %v535
    %v630 = vunpack.c.h.b16 %v535
    %v631 = vunpack.c.l.b16 %v536
    %v632 = vunpack.c.h.b16 %v536
    %v633 = vunpack.c.l.b16 %v537
    %v634 = vunpack.c.h.b16 %v537
    %v635 = vunpack.c.l.b16 %v538
    %v636 = vunpack.c.h.b16 %v538
    %v637 = vunpack.c.l.b16 %v539
    %v638 = vunpack.c.h.b16 %v539
    %v639 = vunpack.c.l.b16 %v540
    %v640 = vunpack.c.h.b16 %v540
    %v641 = vunpack.c.l.b16 %v541
    %v642 = vunpack.c.h.b16 %v541
    %v643 = vunpack.c.l.b16 %v542
    %v644 = vunpack.c.h.b16 %v542
    %v645 = vpack.c.b16 %v583, %v581
    %v646 = vpack.c.b16 %v584, %v582
    %v647 = vpack.c.b16 %v587, %v585
    %v648 = vpack.c.b16 %v588, %v586
    %v649 = vpack.c.b16 %v591, %v589
    %v650 = vpack.c.b16 %v592, %v590
    %v651 = vpack.c.b16 %v595, %v593
    %v652 = vpack.c.b16 %v596, %v594
    %v653 = vpack.c.b16 %v599, %v597
    %v654 = vpack.c.b16 %v600, %v598
    %v655 = vpack.c.b16 %v603, %v601
    %v656 = vpack.c.b16 %v604, %v602
    %v657 = vpack.c.b16 %v607, %v605
    %v658 = vpack.c.b16 %v608, %v606
    %v659 = vpack.c.b16 %v611, %v609
    %v660 = vpack.c.b16 %v612, %v610
    %v661 = vpack.c.b16 %v615, %v613
    %v662 = vpack.c.b16 %v616, %v614
    %v663 = vpack.c.b16 %v619, %v617
    %v664 = vpack.c.b16 %v620, %v618
    %v665 = vpack.c.b16 %v623, %v621
    %v666 = vpack.c.b16 %v624, %v622
    %v667 = vpack.c.b16 %v627, %v625
    %v668 = vpack.c.b16 %v628, %v626
    %v669 = vpack.c.b16 %v631, %v629
    %v670 = vpack.c.b16 %v632, %v630
    %v671 = vpack.c.b16 %v635, %v633
    %v672 = vpack.c.b16 %v636, %v634
    %v673 = vpack.c.b16 %v639, %v637
    %v674 = vpack.c.b16 %v640, %v638
    %v675 = vpack.c.b16 %v643, %v641
    %v676 = vpack.c.b16 %v644, %v642
    %709 = vmatpush.bf16.msra.mxu0 %v659
    %710 = vmatpush.bf16.msra.mxu0 %v657
    %711 = vmatpush.bf16.msra.mxu0 %v655
    %712 = vmatpush.bf16.msra.mxu0 %v653
    %713 = vmatpush.bf16.msra.mxu0 %v651
    %714 = vmatpush.bf16.msra.mxu0 %v649
    %715 = vmatpush.bf16.msra.mxu0 %v647
    %716 = vmatpush.bf16.msra.mxu0 %v645
    %717 = vmatmul.bf16.gmra.mxu0 %v509
    %v718 = vpop.f32.mrf.mxu0
    %v719 = vadd.f32 %v545, %v718
    %v720 = vpop.f32.mrf.mxu0
    %721 = vdwg.mxu0
    %722 = vmatpush.bf16.msra.mxu0 %v675
    %723 = vmatpush.bf16.msra.mxu0 %v673
    %724 = vmatpush.bf16.msra.mxu0 %v671
    %725 = vmatpush.bf16.msra.mxu0 %v669
    %726 = vmatpush.bf16.msra.mxu0 %v667
    %727 = vmatpush.bf16.msra.mxu0 %v665
    %728 = vmatpush.bf16.msra.mxu0 %v663
    %729 = vmatpush.bf16.msra.mxu0 %v661
    %730 = vmatmul.bf16.gmra.mxu0 %v510
    %v731 = vpop.f32.mrf.mxu0
    %v732 = vadd.f32 %v719, %v731
    %v733 = vpop.f32.mrf.mxu0
    %734 = vdwg.mxu0
    %735 = vmatpush.bf16.msra.mxu0 %v660
    %736 = vmatpush.bf16.msra.mxu0 %v658
    %737 = vmatpush.bf16.msra.mxu0 %v656
    %738 = vmatpush.bf16.msra.mxu0 %v654
    %739 = vmatpush.bf16.msra.mxu0 %v652
    %740 = vmatpush.bf16.msra.mxu0 %v650
    %741 = vmatpush.bf16.msra.mxu0 %v648
    %742 = vmatpush.bf16.msra.mxu0 %v646
    %743 = vmatmul.bf16.gmra.mxu0 %v509
    %v744 = vpop.f32.mrf.mxu0
    %v745 = vadd.f32 %v546, %v744
    %v746 = vpop.f32.mrf.mxu0
    %747 = vdwg.mxu0
    %748 = vmatpush.bf16.msra.mxu0 %v676
    %749 = vmatpush.bf16.msra.mxu0 %v674
    %750 = vmatpush.bf16.msra.mxu0 %v672
    %751 = vmatpush.bf16.msra.mxu0 %v670
    %752 = vmatpush.bf16.msra.mxu0 %v668
    %753 = vmatpush.bf16.msra.mxu0 %v666
    %754 = vmatpush.bf16.msra.mxu0 %v664
    %755 = vmatpush.bf16.msra.mxu0 %v662
    %756 = vmatmul.bf16.gmra.mxu0 %v510
    %v757 = vpop.f32.mrf.mxu0
    %v758 = vadd.f32 %v745, %v757
    %v759 = vpop.f32.mrf.mxu0
    %760 = vdwg.mxu0
    %v761 = vmax.f32 %v732, 0.0
    %v762 = vmax.f32 %v758, 0.0
    %v763 = vpack.c.bf16 %v761, %v761
    %v764 = vpack.c.bf16 %v762, %v762
    %v765 = vld [vmem:[#allocation11] sm:$0xf]
    %v766 = vld [vmem:[#allocation11 + $0x4] sm:$0xf]
    %v767 = vld [vmem:[#allocation11 + $0x8] sm:$0xf]
    %v768 = vld [vmem:[#allocation11 + $0xc] sm:$0xf]
    %v769 = vld [vmem:[#allocation11 + $0x10] sm:$0xf]
    %v770 = vld [vmem:[#allocation11 + $0x14] sm:$0xf]
    %v771 = vld [vmem:[#allocation11 + $0x18] sm:$0xf]
    %v772 = vld [vmem:[#allocation11 + $0x1c] sm:$0xf]
    %v773 = vld [vmem:[#allocation11 + $0x20] sm:$0xf]
    %v774 = vld [vmem:[#allocation11 + $0x24] sm:$0xf]
    %v775 = vld [vmem:[#allocation11 + $0x28] sm:$0xf]
    %v776 = vld [vmem:[#allocation11 + $0x2c] sm:$0xf]
    %v777 = vld [vmem:[#allocation11 + $0x30] sm:$0xf]
    %v778 = vld [vmem:[#allocation11 + $0x34] sm:$0xf]
    %v779 = vld [vmem:[#allocation11 + $0x38] sm:$0xf]
    %v780 = vld [vmem:[#allocation11 + $0x3c] sm:$0xf]
    %v781 = vld [vmem:[#allocation11 + $0x40] sm:$0xf]
    %v782 = vld [vmem:[#allocation11 + $0x44] sm:$0xf]
    %v783 = vld [vmem:[#allocation11 + $0x48] sm:$0xf]
    %v784 = vld [vmem:[#allocation11 + $0x4c] sm:$0xf]
    %v785 = vld [vmem:[#allocation11 + $0x50] sm:$0xf]
    %v786 = vld [vmem:[#allocation11 + $0x54] sm:$0xf]
    %v787 = vld [vmem:[#allocation11 + $0x58] sm:$0xf]
    %v788 = vld [vmem:[#allocation11 + $0x5c] sm:$0xf]
    %v789 = vld [vmem:[#allocation11 + $0x60] sm:$0xf]
    %v790 = vld [vmem:[#allocation11 + $0x64] sm:$0xf]
    %v791 = vld [vmem:[#allocation11 + $0x68] sm:$0xf]
    %v792 = vld [vmem:[#allocation11 + $0x6c] sm:$0xf]
    %v793 = vld [vmem:[#allocation11 + $0x70] sm:$0xf]
    %v794 = vld [vmem:[#allocation11 + $0x74] sm:$0xf]
    %v795 = vld [vmem:[#allocation11 + $0x78] sm:$0xf]
    %v796 = vld [vmem:[#allocation11 + $0x7c] sm:$0xf]
    %v797 = vld [vmem:[%s8] sm:$0x1]
    %v799 = vperm.slane %v797, 0
    %v833 = vunpack.c.l.b16 %v765
    %v834 = vunpack.c.l.b16 %v766
    %v835 = vunpack.c.l.b16 %v767
    %v836 = vunpack.c.l.b16 %v768
    %v837 = vunpack.c.l.b16 %v769
    %v838 = vunpack.c.l.b16 %v770
    %v839 = vunpack.c.l.b16 %v771
    %v840 = vunpack.c.l.b16 %v772
    %v841 = vunpack.c.l.b16 %v773
    %v842 = vunpack.c.l.b16 %v774
    %v843 = vunpack.c.l.b16 %v775
    %v844 = vunpack.c.l.b16 %v776
    %v845 = vunpack.c.l.b16 %v777
    %v846 = vunpack.c.l.b16 %v778
    %v847 = vunpack.c.l.b16 %v779
    %v848 = vunpack.c.l.b16 %v780
    %v849 = vunpack.c.l.b16 %v781
    %v850 = vunpack.c.l.b16 %v782
    %v851 = vunpack.c.l.b16 %v783
    %v852 = vunpack.c.l.b16 %v784
    %v853 = vunpack.c.l.b16 %v785
    %v854 = vunpack.c.l.b16 %v786
    %v855 = vunpack.c.l.b16 %v787
    %v856 = vunpack.c.l.b16 %v788
    %v857 = vunpack.c.l.b16 %v789
    %v858 = vunpack.c.l.b16 %v790
    %v859 = vunpack.c.l.b16 %v791
    %v860 = vunpack.c.l.b16 %v792
    %v861 = vunpack.c.l.b16 %v793
    %v862 = vunpack.c.l.b16 %v794
    %v863 = vunpack.c.l.b16 %v795
    %v864 = vunpack.c.l.b16 %v796
    %v865 = vpack.c.b16 %v834, %v833
    %v866 = vpack.c.b16 %v836, %v835
    %v867 = vpack.c.b16 %v838, %v837
    %v868 = vpack.c.b16 %v840, %v839
    %v869 = vpack.c.b16 %v842, %v841
    %v870 = vpack.c.b16 %v844, %v843
    %v871 = vpack.c.b16 %v846, %v845
    %v872 = vpack.c.b16 %v848, %v847
    %v873 = vpack.c.b16 %v850, %v849
    %v874 = vpack.c.b16 %v852, %v851
    %v875 = vpack.c.b16 %v854, %v853
    %v876 = vpack.c.b16 %v856, %v855
    %v877 = vpack.c.b16 %v858, %v857
    %v878 = vpack.c.b16 %v860, %v859
    %v879 = vpack.c.b16 %v862, %v861
    %v880 = vpack.c.b16 %v864, %v863
    %897 = vmatpush.bf16.msra.mxu0 %v872
    %898 = vmatpush.bf16.msra.mxu0 %v871
    %899 = vmatpush.bf16.msra.mxu0 %v870
    %900 = vmatpush.bf16.msra.mxu0 %v869
    %901 = vmatpush.bf16.msra.mxu0 %v868
    %902 = vmatpush.bf16.msra.mxu0 %v867
    %903 = vmatpush.bf16.msra.mxu0 %v866
    %904 = vmatpush.bf16.msra.mxu0 %v865
    %905 = vmatmul.bf16.gmra.mxu0 %v763
    %v906 = vpop.f32.mrf.mxu0
    %v907 = vadd.f32 %v799, %v906
    %v908 = vpop.f32.mrf.mxu0
    %909 = vdwg.mxu0
    %910 = vmatpush.bf16.msra.mxu0 %v880
    %911 = vmatpush.bf16.msra.mxu0 %v879
    %912 = vmatpush.bf16.msra.mxu0 %v878
    %913 = vmatpush.bf16.msra.mxu0 %v877
    %914 = vmatpush.bf16.msra.mxu0 %v876
    %915 = vmatpush.bf16.msra.mxu0 %v875
    %916 = vmatpush.bf16.msra.mxu0 %v874
    %917 = vmatpush.bf16.msra.mxu0 %v873
    %918 = vmatmul.bf16.gmra.mxu0 %v764
    %v919 = vpop.f32.mrf.mxu0
    %v920 = vadd.f32 %v907, %v919
    %v921 = vpop.f32.mrf.mxu0
    %922 = vdwg.mxu0
    %923 = vst [vmem:[#allocation13] sm:$0xff] %v920
    // Predicated region
    $region62: #{tpu_custom_call.1} parent=1 // pred_check
      _
    $region63: #{tpu_custom_call.1} parent=1 // pred_check_branch
      %925 = sbr.rel (0) target = $region65
    $region64: #{tpu_custom_call.1} parent=1 // pred_region
      %927 = vsyncadd [#allocation4], 0
      %s929 = sshll.u32 [#allocation13], 4
      %s930 = int_to_ptr.vmem [resolvable:$true] %s929
      %s931 = sshll.u32 %s9, 4
      %s932 = int_to_ptr.hbm [resolvable:$true] %s931
      %934 = dma.vmem_to_hbm [thread:$0]  %s930, 128, %s932, [#allocation4]
    $region65: #{tpu_custom_call.1} parent=1 // pred_fallthru
      _
    // Predicated region
    $region66: #{tpu_custom_call.1} parent=1 // pred_check
      _
    $region67: #{tpu_custom_call.1} parent=1 // pred_check_branch
      %936 = sbr.rel (0) target = $region69
    $region68: #{tpu_custom_call.1} parent=1 // pred_region
      %938 = dma.done [#allocation4], 128
    $region69: #{tpu_custom_call.1} parent=1 // pred_fallthru
      _
    %939 = vsyncpa [#allocation3], 1
    %940 = vsyncpa [#allocation6], 1
    %941 = vsyncpa [#allocation9], 1
    %942 = vsyncpa [#allocation12], 1
    %943 = vsyncpa [#allocation4], 1

</llo_original>
